<compile_context>
chip_gen: v5e
topology: v5e:2x2
jax: 0.10.0
libtpu: 0.0.40
codegen_flags: <defaults>
</compile_context>

<pallas_src>
import math

import jax
import jax.numpy as jnp
from jax import lax
from jax.experimental import pallas as pl
from jax.experimental.pallas import tpu as pltpu


_LANE = 128
_NEG_INIT = float(jnp.finfo(jnp.float32).min)


def _round_up(n, m):
    return ((n + m - 1) // m) * m


def _make_lr_kernel(seq_len, ts, mask_seq):
    """Builds the kernel with static (seq_len, tile, mask?) baked in."""

    def kernel(x_ref, w_ref, o_ref, acc_ref):
        # x_ref: (TB, TS, D)  w_ref: (1, D)  o_ref: (TB, 1)  acc_ref: (TB, D)
        s = pl.program_id(1)

        @pl.when(s == 0)
        def _():
            acc_ref[...] = jnp.full_like(acc_ref, _NEG_INIT)

        x = x_ref[...]
        if mask_seq:
            # Last sequence tile may run past S; replace out-of-range rows
            # with a very negative value so they never win the max.
            pos = s * ts + lax.broadcasted_iota(jnp.int32, (1, ts, 1), 1)
            x = jnp.where(pos < seq_len, x, _NEG_INIT)

        # Running max over the sequence axis: tile-local reduce + VPU accumulate.
        acc_ref[...] = jnp.maximum(acc_ref[...], jnp.max(x, axis=1))

        @pl.when(s == pl.num_programs(1) - 1)
        def _():
            # (TB, D) * (1, D) broadcast then lane-reduce: VPU + XLU path.
            o_ref[...] = jnp.sum(acc_ref[...] * w_ref[...], axis=-1, keepdims=True)

    return kernel


def lr_forward(x, w, *, tb_max=64, ts_max=512):
    """x: (B, S, D) f32, w: (1, D) f32 -> (B,) f32 == max_S(x) @ w.T (squeezed)."""
    x = x.astype(jnp.float32)
    w = w.astype(jnp.float32)
    B, S, D = x.shape
    assert w.shape == (1, D)

    # VMEM lane footprint of the feature dim (HBM is NOT padded).
    Dl = _round_up(D, _LANE)

    # Keep each pipelined input buffer under ~8 MiB (double-buffered -> 16 MiB).
    budget_elems = (8 * 1024 * 1024) // 4

    # Batch tile: full B when small (block dim == full dim is always legal),
    # otherwise a multiple of 8 (required by the (TB, 1) output block).
    tb_limit = min(tb_max, max(1, budget_elems // (8 * Dl)))
    if B <= tb_limit:
        TB = B
    else:
        TB = max(8, (tb_limit // 8) * 8)

    # Sequence tile: full S when it fits, otherwise a multiple of 8 under budget.
    ts_cap = max(8, ((budget_elems // (TB * Dl)) // 8) * 8)
    TS = S if S <= ts_cap else min(ts_max, ts_cap)

    grid = (pl.cdiv(B, TB), pl.cdiv(S, TS))
    mask_seq = (S % TS) != 0

    kernel = _make_lr_kernel(S, TS, mask_seq)

    cost = pl.CostEstimate(
        flops=B * S * D + 2 * B * D,            # compares + final MACs
        transcendentals=0,
        bytes_accessed=4 * (B * S * D + D + B),  # no padded copies anymore
    )

    out = pl.pallas_call(
        kernel,
        out_shape=jax.ShapeDtypeStruct((B, 1), jnp.float32),
        grid_spec=pltpu.PrefetchScalarGridSpec(
            num_scalar_prefetch=0,
            grid=grid,
            in_specs=[
                pl.BlockSpec((TB, TS, D), lambda b, s: (b, s, 0)),
                pl.BlockSpec((1, D), lambda b, s: (0, 0)),   # loop-invariant weight
            ],
            out_specs=pl.BlockSpec((TB, 1), lambda b, s: (b, 0)),
            scratch_shapes=[pltpu.VMEM((TB, D), jnp.float32)],
        ),
        compiler_params=pltpu.CompilerParams(
            dimension_semantics=("parallel", "arbitrary"),
            vmem_limit_bytes=32 * 1024 * 1024,
        ),
        cost_estimate=cost,
    )(x, w)

    return out[:, 0]   # squeeze, matching torch's .squeeze() for B > 1


def init_weight(key, input_size):
    # nn.init.xavier_normal_ for a (1, input_size) weight:
    # std = gain * sqrt(2 / (fan_in + fan_out)) = sqrt(2 / (input_size + 1))
    std = math.sqrt(2.0 / (input_size + 1))
    return jax.random.normal(key, (1, input_size), dtype=jnp.float32) * std


if __name__ == "__main__":
    input_size = 10
    B, S, D = 4, 8, input_size

    key = jax.random.PRNGKey(0)
    kx, kw = jax.random.split(key)

    x = jax.random.normal(kx, (B, S, D), dtype=jnp.float32)
    w = init_weight(kw, input_size)       # (1, D), same layout as nn.Linear.weight

    out = jax.jit(lr_forward)(x, w)
    jax.block_until_ready(out)

    # Reference check in plain JAX (same math as the PyTorch forward).
    ref = (jnp.max(x, axis=1) @ w.T)[:, 0]
    assert out.shape == (B,)
    assert jnp.allclose(out, ref, atol=1e-5, rtol=1e-5)

    print("KERNEL_OK")
</pallas_src>

<mosaic_0001>
module attributes {stable_mosaic.version = 11 : i64} {
  func.func @kernel(%arg0: i32, %arg1: i32, %arg2: memref<4x8x10xf32, #tpu.memory_space<vmem>>, %arg3: memref<1x10xf32, #tpu.memory_space<vmem>>, %arg4: memref<4x1xf32, #tpu.memory_space<vmem>>, %arg5: memref<4x10xf32, #tpu.memory_space<vmem>>) attributes {dimension_semantics = [#tpu.dimension_semantics<parallel>, #tpu.dimension_semantics<arbitrary>], iteration_bounds = array<i64: 1, 1>, scalar_prefetch = 0 : i64, scratch_operands = 1 : i64, tpu.core_type = #tpu.core_type<tc>, window_params = [{transform_indices = @transform_0, window_bounds = array<i64: 4, 8, 10>}, {pipeline_mode = #tpu.pipeline_mode<synchronous>, transform_indices = @transform_1, window_bounds = array<i64: 1, 10>}, {transform_indices = @transform_2, window_bounds = array<i64: 4, 1>}]} {
    %c0_i32 = arith.constant 0 : i32
    %0 = arith.cmpi eq, %arg1, %c0_i32 : i32
    %1 = arith.extui %0 : i1 to i32
    %c0_i32_0 = arith.constant 0 : i32
    %2 = arith.cmpi ne, %1, %c0_i32_0 : i32
    scf.if %2 {
      %cst_9 = arith.constant -3.40282347E+38 : f32
      %11 = vector.broadcast %cst_9 : f32 to vector<4x10xf32>
      %c0_10 = arith.constant 0 : index
      %c0_11 = arith.constant 0 : index
      %12 = vector.load %arg5[%c0_10, %c0_11] : memref<4x10xf32, #tpu.memory_space<vmem>>, vector<4x10xf32>
      tpu.vector_store %arg5[%c0_10, %c0_11], %11 {strides = array<i32>} : memref<4x10xf32, #tpu.memory_space<vmem>>, vector<4x10xf32>,
    } else {
    }
    %c0 = arith.constant 0 : index
    %c0_1 = arith.constant 0 : index
    %c0_2 = arith.constant 0 : index
    %3 = vector.load %arg2[%c0, %c0_1, %c0_2] : memref<4x8x10xf32, #tpu.memory_space<vmem>>, vector<4x8x10xf32>
    %c0_3 = arith.constant 0 : index
    %c0_4 = arith.constant 0 : index
    %4 = vector.load %arg5[%c0_3, %c0_4] : memref<4x10xf32, #tpu.memory_space<vmem>>, vector<4x10xf32>
    %cst = arith.constant dense<0xFF800000> : vector<4x10xf32>
    %5 = vector.multi_reduction <maximumf>, %3, %cst [1] : vector<4x8x10xf32> to vector<4x10xf32>
    %6 = arith.maximumf %4, %5 : vector<4x10xf32>
    %c0_5 = arith.constant 0 : index
    %c0_6 = arith.constant 0 : index
    %7 = vector.load %arg5[%c0_5, %c0_6] : memref<4x10xf32, #tpu.memory_space<vmem>>, vector<4x10xf32>
    tpu.vector_store %arg5[%c0_5, %c0_6], %6 {strides = array<i32>} : memref<4x10xf32, #tpu.memory_space<vmem>>, vector<4x10xf32>,
    %c0_i32_7 = arith.constant 0 : i32
    %8 = arith.cmpi eq, %arg1, %c0_i32_7 : i32
    %9 = arith.extui %8 : i1 to i32
    %c0_i32_8 = arith.constant 0 : i32
    %10 = arith.cmpi ne, %9, %c0_i32_8 : i32
    scf.if %10 {
      %c0_9 = arith.constant 0 : index
      %c0_10 = arith.constant 0 : index
      %11 = vector.load %arg5[%c0_9, %c0_10] : memref<4x10xf32, #tpu.memory_space<vmem>>, vector<4x10xf32>
      %c0_11 = arith.constant 0 : index
      %c0_12 = arith.constant 0 : index
      %12 = vector.load %arg3[%c0_11, %c0_12] : memref<1x10xf32, #tpu.memory_space<vmem>>, vector<1x10xf32>
      %13 = vector.broadcast %12 : vector<1x10xf32> to vector<4x10xf32>
      %14 = arith.mulf %11, %13 : vector<4x10xf32>
      %cst_13 = arith.constant dense<0.000000e+00> : vector<4xf32>
      %15 = vector.multi_reduction <add>, %14, %cst_13 [1] : vector<4x10xf32> to vector<4xf32>
      %16 = vector.shape_cast %15 : vector<4xf32> to vector<4x1xf32>
      %c0_14 = arith.constant 0 : index
      %c0_15 = arith.constant 0 : index
      %17 = vector.load %arg4[%c0_14, %c0_15] : memref<4x1xf32, #tpu.memory_space<vmem>>, vector<4x1xf32>
      tpu.vector_store %arg4[%c0_14, %c0_15], %16 {strides = array<i32>} : memref<4x1xf32, #tpu.memory_space<vmem>>, vector<4x1xf32>,
    } else {
    }
    return
  }
  func.func @transform_0(%arg0: i32, %arg1: i32) -> (i32, i32, i32) {
    %c0_i32 = arith.constant 0 : i32
    %c0_i32_0 = arith.constant 0 : i32
    return %arg0, %arg1, %c0_i32 : i32, i32, i32
  }
  func.func @transform_1(%arg0: i32, %arg1: i32) -> (i32, i32) {
    %c0_i32 = arith.constant 0 : i32
    %c0_i32_0 = arith.constant 0 : i32
    %c0_i32_1 = arith.constant 0 : i32
    return %c0_i32, %c0_i32_0 : i32, i32
  }
  func.func @transform_2(%arg0: i32, %arg1: i32) -> (i32, i32) {
    %c0_i32 = arith.constant 0 : i32
    %c0_i32_0 = arith.constant 0 : i32
    return %arg0, %c0_i32 : i32, i32
  }
}

</mosaic_0001>

<llo_original>
// kernel: lr_forward.1
$region0: #{lr_forward.1}
  #allocation0 [shape = 'u32[]', space=smem, size = 0x4, offset = 0x4, fixed_abs, tag = 'smem constant byte address 0x4 - core index']
  #allocation1 [shape = 'u32[72,128]{1,0:T(1,128)}', space=vmem, size = 0x9000, scoped, tag = 'internal scratch']
  #allocation2 [shape = 'f32[4,10]{1,0:T(4,128)}', space=vmem, size = 0x800, scoped, tag = 'scratch operand']
  %s0 = inlined_call_operand.hbm [shape: f32[4,8,10], index: 0, kind: input, shape index: {}]
  %s1 = inlined_call_operand.hbm [shape: f32[1,10], index: 1, kind: input, shape index: {}]
  %s2 = inlined_call_operand.vmem [shape: f32[4,1], index: 2, kind: output, shape index: {}]
  %s3 = sld [smem:[#allocation0]]
  $region34: #{lr_forward.1} parent=0
    _
  %s5 = ssub.s32 1, %s3
  %s6 = scalar_select 0, %s5, %s3
  $region1: #{lr_forward.1} parent=0
    #allocation3 [shape = 'u8[16384]{0}', space=vmem, size = 0x4000, scoped, tag = 'input window, operand 0, single buffered']
    #allocation4 [shape = 's32[1]{0}', space=sflag, size = 0x4, scoped, tag = 'scoped memory for lr_forward.1']
    #allocation5 [shape = 'u8[512]{0}', space=vmem, size = 0x400, scoped, tag = 'input window, operand 1, single buffered']
    #allocation6 [shape = 's32[1]{0}', space=sflag, size = 0x4, scoped, tag = 'scoped memory for lr_forward.1']
    %7 = vsyncpa [#allocation4], 0
    %8 = vsyncpa [#allocation6], 0
    // Predicated region
    $region2: #{lr_forward.1} parent=1 // pred_check
      _
    $region3: #{lr_forward.1} parent=1 // pred_check_branch
      %10 = sbr.rel (0) target = $region5
    $region4: #{lr_forward.1} parent=1 // pred_region
      %12 = vsyncadd [#allocation4], 0
      %s13 = sshll.u32 %s0, 4
      %s14 = int_to_ptr.hbm [resolvable:$true] %s13
      %s15 = sshll.u32 [#allocation3], 4
      %s16 = int_to_ptr.vmem [resolvable:$true] %s15
      %21 = dma.hbm_to_vmem [thread:$0]  %s14, 512, %s16, [#allocation4], 128, 128, 8
    $region5: #{lr_forward.1} parent=1 // pred_fallthru
      _
    // Predicated region
    $region6: #{lr_forward.1} parent=1 // pred_check
      _
    $region7: #{lr_forward.1} parent=1 // pred_check_branch
      %23 = sbr.rel (0) target = $region9
    $region8: #{lr_forward.1} parent=1 // pred_region
      %25 = vsyncadd [#allocation6], 0
      %s27 = sshll.u32 %s1, 4
      %s28 = int_to_ptr.hbm [resolvable:$true] %s27
      %s29 = sshll.u32 [#allocation5], 4
      %s30 = int_to_ptr.vmem [resolvable:$true] %s29
      %32 = dma.hbm_to_vmem [thread:$0]  %s28, 16, %s30, [#allocation6]
    $region9: #{lr_forward.1} parent=1 // pred_fallthru
      _
    // Predicated region
    $region10: #{lr_forward.1} parent=1 // pred_check
      _
    $region11: #{lr_forward.1} parent=1 // pred_check_branch
      %34 = sbr.rel (0) target = $region13
    $region12: #{lr_forward.1} parent=1 // pred_region
      %36 = dma.done [#allocation4], 512
    $region13: #{lr_forward.1} parent=1 // pred_fallthru
      _
    // Predicated region
    $region14: #{lr_forward.1} parent=1 // pred_check
      _
    $region15: #{lr_forward.1} parent=1 // pred_check_branch
      %38 = sbr.rel (0) target = $region17
    $region16: #{lr_forward.1} parent=1 // pred_region
      %40 = dma.done [#allocation6], 16
    $region17: #{lr_forward.1} parent=1 // pred_fallthru
      _
    %p41 = scmp.eq.s32.totalorder 0, 0
    // Predicated region
    $region18: #{lr_forward.1} parent=1 // pred_check
      %p42 = pneg %p41
    $region19: #{lr_forward.1} parent=1 // pred_check_branch
      %44 = sbr.rel (%p42) target = $region21
    $region20: #{lr_forward.1} parent=1 // pred_region
      %vm45 = vcmask 76800
      %46 = vst.msk [vmem:[#allocation2] sm:$0xf] %vm45, -3.4028235e+38
    $region21: #{lr_forward.1} parent=1 // pred_fallthru
      _
    %v47 = vld [vmem:[#allocation3] sm:$0xff]
    %v48 = vld [vmem:[#allocation3 + $0x8] sm:$0xff]
    %v49 = vld [vmem:[#allocation3 + $0x10] sm:$0xff]
    %v50 = vld [vmem:[#allocation3 + $0x18] sm:$0xff]
    %v51 = vld [vmem:[#allocation2] sm:$0xf]
    %vm52 = vcmask 80896
    %v53 = vsel %vm52, %v47, -inf
    %v54 = vrot.slane %v53, 4
    %v55 = vmax.f32 %v53, %v54
    %v56 = vrot.slane %v55, 2
    %v57 = vmax.f32 %v55, %v56
    %v58 = vrot.slane %v57, 1
    %v59 = vmax.f32 %v57, %v58
    %v60 = vsel %vm52, %v48, -inf
    %v61 = vrot.slane %v60, 4
    %v62 = vmax.f32 %v60, %v61
    %v63 = vrot.slane %v62, 2
    %v64 = vmax.f32 %v62, %v63
    %v65 = vrot.slane %v64, 1
    %v66 = vmax.f32 %v64, %v65
    %v67 = vsel %vm52, %v49, -inf
    %v68 = vrot.slane %v67, 4
    %v69 = vmax.f32 %v67, %v68
    %v70 = vrot.slane %v69, 2
    %v71 = vmax.f32 %v69, %v70
    %v72 = vrot.slane %v71, 1
    %v73 = vmax.f32 %v71, %v72
    %v74 = vsel %vm52, %v50, -inf
    %v75 = vrot.slane %v74, 4
    %v76 = vmax.f32 %v74, %v75
    %v77 = vrot.slane %v76, 2
    %v78 = vmax.f32 %v76, %v77
    %v79 = vrot.slane %v78, 1
    %v80 = vmax.f32 %v78, %v79
    %vm85 = vcmask 1041409
    %v86 = vsel %vm85, %v66, %v59
    %vm87 = vcmask 1042434
    %v88 = vsel %vm87, %v73, %v86
    %vm89 = vcmask 1043459
    %v90 = vsel %vm89, %v80, %v88
    %v92 = vmax.f32 %v51, %v90
    %vm93 = vcmask 76800
    %94 = vst.msk [vmem:[#allocation2] sm:$0xf] %vm93, %v92
    // Predicated region
    $region22: #{lr_forward.1} parent=1 // pred_check
      %p95 = pneg %p41
    $region23: #{lr_forward.1} parent=1 // pred_check_branch
      %97 = sbr.rel (%p95) target = $region25
    $region24: #{lr_forward.1} parent=1 // pred_region
      %v98 = vld [vmem:[#allocation2] sm:$0xf]
      %v99 = vld [vmem:[#allocation5] sm:$0x1]
      %v101 = vperm.slane %v99, 0
      %v103 = vmul.f32 %v98, %v101
      %v104 = vsel %vm93, %v103, 0.0
      %105 = vadd.xlane.f32.xlu0 %v104
      %v106 = vpop.xlane.xlu0 %105
      %vm107 = vcmask 3072
      %108 = vst.msk [vmem:[%s2] sm:$0xf] %vm107, %v106
    $region25: #{lr_forward.1} parent=1 // pred_fallthru
      _
    // Predicated region
    $region26: #{lr_forward.1} parent=1 // pred_check
      _
    $region27: #{lr_forward.1} parent=1 // pred_check_branch
      %110 = sbr.rel (0) target = $region29
    $region28: #{lr_forward.1} parent=1 // pred_region
      _
    $region29: #{lr_forward.1} parent=1 // pred_fallthru
      _
    // Predicated region
    $region30: #{lr_forward.1} parent=1 // pred_check
      _
    $region31: #{lr_forward.1} parent=1 // pred_check_branch
      %112 = sbr.rel (0) target = $region33
    $region32: #{lr_forward.1} parent=1 // pred_region
      _
    $region33: #{lr_forward.1} parent=1 // pred_fallthru
      _
    %113 = vsyncpa [#allocation4], 1
    %114 = vsyncpa [#allocation6], 1

</llo_original>
